<compile_context>
chip_gen: v7x
topology: tpu7x:2x2x1
jax: 0.10.0
libtpu: 0.0.40
codegen_flags: <defaults>
</compile_context>

<pallas_src>
import functools

import jax
import jax.numpy as jnp
from jax.experimental import pallas as pl
from jax.experimental.pallas import tpu as pltpu

EPS = 1e-5


# --------------------------------------------------------------------------
# Pass A: per-channel sum / sumsq reduction + fold into per-(B,F) scale/shift.
# --------------------------------------------------------------------------
def _cbn_stats_kernel(x_ref, c_ref, wg_t_ref, bg_ref, wb_t_ref, bb_ref,
                      scale_ref, shift_ref, sum_ref, sq_ref, *, inv_n):
    b = pl.program_id(0)
    t = pl.program_id(1)

    @pl.when((b == 0) & (t == 0))
    def _init():
        sum_ref[...] = jnp.zeros_like(sum_ref)
        sq_ref[...] = jnp.zeros_like(sq_ref)

    x = x_ref[...].astype(jnp.float32)                  # (bt, F, tt)
    sum_ref[...] += jnp.sum(x, axis=(0, 2))[None, :]    # (1, F)
    sq_ref[...] += jnp.sum(x * x, axis=(0, 2))[None, :]

    @pl.when((b == pl.num_programs(0) - 1) & (t == pl.num_programs(1) - 1))
    def _finalize():
        mean = sum_ref[...] * inv_n                     # (1, F)
        var = sq_ref[...] * inv_n - mean * mean
        var = jnp.maximum(var, 0.0)
        inv_std = jax.lax.rsqrt(var + EPS)              # (1, F), EUP

        # 1x1 conv on a length-1 sequence == linear map on the channel dim.
        # Done exactly once over the whole grid.
        cvec = c_ref[...].astype(jnp.float32)           # (B, C)
        gamma = jnp.dot(cvec, wg_t_ref[...],
                        preferred_element_type=jnp.float32) + bg_ref[...]
        beta = jnp.dot(cvec, wb_t_ref[...],
                       preferred_element_type=jnp.float32) + bb_ref[...]

        scale = gamma * inv_std                         # (B, F)
        shift = beta - mean * scale                     # (B, F)
        scale_ref[...] = scale[:, :, None]              # (B, F, 1)
        shift_ref[...] = shift[:, :, None]


# --------------------------------------------------------------------------
# Pass B: streaming normalize, one FMA per element.
# --------------------------------------------------------------------------
def _cbn_apply_kernel(x_ref, scale_ref, shift_ref, out_ref):
    x = x_ref[...].astype(jnp.float32)                  # (bt, F, tt)
    # scale/shift are (bt, F, 1): lane-broadcast against x.
    out_ref[...] = (scale_ref[...] * x + shift_ref[...]).astype(out_ref.dtype)


def _choose_tiles(B, F, T, itemsize, target_bytes=2 * 1024 * 1024):
    """Pick (B_tile, T_tile): lane dim a multiple of 128 when T allows,
    tile footprint kept near `target_bytes` (fits v7x VMEM with 2x buffering)."""
    if T % 128 == 0:
        tt = 128
        while (tt < T and tt < 1024 and T % (tt * 2) == 0
               and (tt * 2) * F * itemsize <= target_bytes):
            tt *= 2
    else:
        tt = T  # small / ragged T: take the full extent (block == full dim is legal)
    bt = 1
    for cand in (8, 4, 2):
        if B % cand == 0:
            bt = cand
            break
    while bt > 1 and bt * F * tt * itemsize > target_bytes:
        bt //= 2
    if B % bt != 0:
        bt = 1
    return bt, tt


def cbatchnorm1d(x, c, w_gamma, b_gamma, w_beta, b_beta):
    """x: (B, F, T), c: (B, C), w_*: (F, C), b_*: (F,)."""
    B, F, T = x.shape
    C = c.shape[1]
    x_itemsize = jnp.dtype(x.dtype).itemsize

    # Glue: pre-transpose conv weights so the kernel does c @ W^T directly.
    wg_t = jnp.asarray(w_gamma, jnp.float32).T.reshape(C, F)
    wb_t = jnp.asarray(w_beta, jnp.float32).T.reshape(C, F)
    bg = jnp.asarray(b_gamma, jnp.float32).reshape(1, F)
    bb = jnp.asarray(b_beta, jnp.float32).reshape(1, F)
    c32 = jnp.asarray(c, jnp.float32)

    bt, tt = _choose_tiles(B, F, T, x_itemsize)
    nb, nt = B // bt, T // tt

    # VMEM budget / cost estimates derived from the actual footprint.
    x_tile_bytes = bt * F * tt * max(x_itemsize, 4)
    param_bytes = (B * C + 2 * C * F + 2 * F) * 4
    ss_bytes = 2 * B * F * 4
    vmem_limit = int(min(64 * 1024 * 1024,
                         max(16 * 1024 * 1024,
                             10 * x_tile_bytes + 2 * param_bytes
                             + 4 * ss_bytes + (4 << 20))))
    n_elem = B * F * T

    x_spec = pl.BlockSpec((bt, F, tt), lambda b, t: (b, 0, t))

    # ---- Pass A: stats + fold into scale/shift -------------------------------
    scale, shift = pl.pallas_call(
        functools.partial(_cbn_stats_kernel, inv_n=1.0 / float(B * T)),
        out_shape=(jax.ShapeDtypeStruct((B, F, 1), jnp.float32),
                   jax.ShapeDtypeStruct((B, F, 1), jnp.float32)),
        grid_spec=pltpu.PrefetchScalarGridSpec(
            num_scalar_prefetch=0,
            grid=(nb, nt),
            in_specs=[
                x_spec,
                pl.BlockSpec((B, C), lambda b, t: (0, 0)),   # c      (resident)
                pl.BlockSpec((C, F), lambda b, t: (0, 0)),   # Wg^T
                pl.BlockSpec((1, F), lambda b, t: (0, 0)),   # bg
                pl.BlockSpec((C, F), lambda b, t: (0, 0)),   # Wb^T
                pl.BlockSpec((1, F), lambda b, t: (0, 0)),   # bb
            ],
            out_specs=(
                pl.BlockSpec((B, F, 1), lambda b, t: (0, 0, 0)),
                pl.BlockSpec((B, F, 1), lambda b, t: (0, 0, 0)),
            ),
            scratch_shapes=[pltpu.VMEM((1, F), jnp.float32),
                            pltpu.VMEM((1, F), jnp.float32)]),
        compiler_params=pltpu.CompilerParams(
            dimension_semantics=("arbitrary", "arbitrary"),
            vmem_limit_bytes=vmem_limit),
        cost_estimate=pl.CostEstimate(
            flops=3 * n_elem + 4 * B * C * F,
            transcendentals=F,
            bytes_accessed=n_elem * x_itemsize + param_bytes + ss_bytes),
    )(x, c32, wg_t, bg, wb_t, bb)

    # ---- Pass B: normalize (parallel over both axes -> uses both v7x TCs) ----
    out = pl.pallas_call(
        _cbn_apply_kernel,
        out_shape=jax.ShapeDtypeStruct((B, F, T), x.dtype),
        grid_spec=pltpu.PrefetchScalarGridSpec(
            num_scalar_prefetch=0,
            grid=(nb, nt),
            in_specs=[
                x_spec,
                pl.BlockSpec((bt, F, 1), lambda b, t: (b, 0, 0)),
                pl.BlockSpec((bt, F, 1), lambda b, t: (b, 0, 0)),
            ],
            out_specs=pl.BlockSpec((bt, F, tt), lambda b, t: (b, 0, t))),
        compiler_params=pltpu.CompilerParams(
            dimension_semantics=("parallel", "parallel"),
            vmem_limit_bytes=vmem_limit),
        cost_estimate=pl.CostEstimate(
            flops=2 * n_elem,
            transcendentals=0,
            bytes_accessed=2 * n_elem * x_itemsize + ss_bytes),
    )(x, scale, shift)
    return out


def cbatchnorm1d_ref(x, c, w_gamma, b_gamma, w_beta, b_beta):
    """Pure-JAX reference mirroring the PyTorch forward (training-mode BN)."""
    gamma = c @ w_gamma.T + b_gamma[None, :]     # (B, F)
    beta = c @ w_beta.T + b_beta[None, :]        # (B, F)
    mean = jnp.mean(x, axis=(0, 2), keepdims=True)
    var = jnp.mean((x - mean) ** 2, axis=(0, 2), keepdims=True)
    net = (x - mean) / jnp.sqrt(var + EPS)
    return gamma[:, :, None] * net + beta[:, :, None]


if __name__ == "__main__":
    def run_case(key, B, C, F, T):
        kx, kc, k1, k2 = jax.random.split(key, 4)
        x = jax.random.normal(kx, (B, F, T), dtype=jnp.float32)
        c = jax.random.normal(kc, (B, C), dtype=jnp.float32)
        # Deterministic params. (reset_parameters() would zero the weights,
        # which trivializes the conv path; small random weights exercise it.)
        w_gamma = 0.1 * jax.random.normal(k1, (F, C), dtype=jnp.float32)
        b_gamma = jnp.ones((F,), dtype=jnp.float32)
        w_beta = 0.1 * jax.random.normal(k2, (F, C), dtype=jnp.float32)
        b_beta = jnp.zeros((F,), dtype=jnp.float32)

        out = jax.block_until_ready(
            cbatchnorm1d(x, c, w_gamma, b_gamma, w_beta, b_beta))
        ref = cbatchnorm1d_ref(x, c, w_gamma, b_gamma, w_beta, b_beta)
        assert out.shape == (B, F, T)
        assert jnp.allclose(out, ref, atol=3e-4, rtol=3e-4), \
            f"mismatch vs reference for shape {(B, F, T)}"

    key = jax.random.PRNGKey(0)
    k_small, k_tiled = jax.random.split(key)
    # Small shapes consistent with the module: batch=2, c_dim=8, f_dim=16, T=32.
    run_case(k_small, B=2, C=8, F=16, T=32)
    # Lane-dense, multi-tile case exercising the gridded two-pass path
    # (B tile = 8, T tile = 128 -> stats grid (2,3), normalize grid (2,3)).
    run_case(k_tiled, B=16, C=8, F=32, T=384)

    print("KERNEL_OK")
</pallas_src>

<mosaic_0001>
module attributes {stable_mosaic.version = 11 : i64} {
  func.func @_cbn_stats_kernel(%arg0: i32, %arg1: i32, %arg2: memref<2x16x32xf32, #tpu.memory_space<vmem>>, %arg3: memref<2x8xf32, #tpu.memory_space<vmem>>, %arg4: memref<8x16xf32, #tpu.memory_space<vmem>>, %arg5: memref<1x16xf32, #tpu.memory_space<vmem>>, %arg6: memref<8x16xf32, #tpu.memory_space<vmem>>, %arg7: memref<1x16xf32, #tpu.memory_space<vmem>>, %arg8: memref<2x16x1xf32, #tpu.memory_space<vmem>>, %arg9: memref<2x16x1xf32, #tpu.memory_space<vmem>>, %arg10: memref<1x16xf32, #tpu.memory_space<vmem>>, %arg11: memref<1x16xf32, #tpu.memory_space<vmem>>) attributes {dimension_semantics = [#tpu.dimension_semantics<arbitrary>, #tpu.dimension_semantics<arbitrary>], iteration_bounds = array<i64: 1, 1>, scalar_prefetch = 0 : i64, scratch_operands = 2 : i64, tpu.core_type = #tpu.core_type<tc>, window_params = [{transform_indices = @transform_0, window_bounds = array<i64: 2, 16, 32>}, {pipeline_mode = #tpu.pipeline_mode<synchronous>, transform_indices = @transform_1, window_bounds = array<i64: 2, 8>}, {pipeline_mode = #tpu.pipeline_mode<synchronous>, transform_indices = @transform_2, window_bounds = array<i64: 8, 16>}, {pipeline_mode = #tpu.pipeline_mode<synchronous>, transform_indices = @transform_3, window_bounds = array<i64: 1, 16>}, {pipeline_mode = #tpu.pipeline_mode<synchronous>, transform_indices = @transform_4, window_bounds = array<i64: 8, 16>}, {pipeline_mode = #tpu.pipeline_mode<synchronous>, transform_indices = @transform_5, window_bounds = array<i64: 1, 16>}, {pipeline_mode = #tpu.pipeline_mode<synchronous>, transform_indices = @transform_6, window_bounds = array<i64: 2, 16, 1>}, {pipeline_mode = #tpu.pipeline_mode<synchronous>, transform_indices = @transform_7, window_bounds = array<i64: 2, 16, 1>}]} {
    %c0_i32 = arith.constant 0 : i32
    %0 = arith.cmpi eq, %arg0, %c0_i32 : i32
    %c0_i32_0 = arith.constant 0 : i32
    %1 = arith.cmpi eq, %arg1, %c0_i32_0 : i32
    %2 = arith.andi %0, %1 : i1
    %3 = arith.extui %2 : i1 to i32
    %c0_i32_1 = arith.constant 0 : i32
    %4 = arith.cmpi ne, %3, %c0_i32_1 : i32
    scf.if %4 {
      %cst_16 = arith.constant 0.000000e+00 : f32
      %22 = vector.broadcast %cst_16 : f32 to vector<1x16xf32>
      %c0_17 = arith.constant 0 : index
      %c0_18 = arith.constant 0 : index
      %23 = vector.load %arg10[%c0_17, %c0_18] : memref<1x16xf32, #tpu.memory_space<vmem>>, vector<1x16xf32>
      tpu.vector_store %arg10[%c0_17, %c0_18], %22 {strides = array<i32>} : memref<1x16xf32, #tpu.memory_space<vmem>>, vector<1x16xf32>,
      %cst_19 = arith.constant 0.000000e+00 : f32
      %24 = vector.broadcast %cst_19 : f32 to vector<1x16xf32>
      %c0_20 = arith.constant 0 : index
      %c0_21 = arith.constant 0 : index
      %25 = vector.load %arg11[%c0_20, %c0_21] : memref<1x16xf32, #tpu.memory_space<vmem>>, vector<1x16xf32>
      tpu.vector_store %arg11[%c0_20, %c0_21], %24 {strides = array<i32>} : memref<1x16xf32, #tpu.memory_space<vmem>>, vector<1x16xf32>,
    } else {
    }
    %c0 = arith.constant 0 : index
    %c0_2 = arith.constant 0 : index
    %c0_3 = arith.constant 0 : index
    %5 = vector.load %arg2[%c0, %c0_2, %c0_3] : memref<2x16x32xf32, #tpu.memory_space<vmem>>, vector<2x16x32xf32>
    %c0_4 = arith.constant 0 : index
    %c0_5 = arith.constant 0 : index
    %6 = vector.load %arg10[%c0_4, %c0_5] : memref<1x16xf32, #tpu.memory_space<vmem>>, vector<1x16xf32>
    %cst = arith.constant dense<0.000000e+00> : vector<16xf32>
    %7 = vector.multi_reduction <add>, %5, %cst [0, 2] : vector<2x16x32xf32> to vector<16xf32>
    %8 = vector.shape_cast %7 : vector<16xf32> to vector<1x16xf32>
    %9 = arith.addf %6, %8 : vector<1x16xf32>
    %c0_6 = arith.constant 0 : index
    %c0_7 = arith.constant 0 : index
    %10 = vector.load %arg10[%c0_6, %c0_7] : memref<1x16xf32, #tpu.memory_space<vmem>>, vector<1x16xf32>
    tpu.vector_store %arg10[%c0_6, %c0_7], %9 {strides = array<i32>} : memref<1x16xf32, #tpu.memory_space<vmem>>, vector<1x16xf32>,
    %c0_8 = arith.constant 0 : index
    %c0_9 = arith.constant 0 : index
    %11 = vector.load %arg11[%c0_8, %c0_9] : memref<1x16xf32, #tpu.memory_space<vmem>>, vector<1x16xf32>
    %12 = arith.mulf %5, %5 : vector<2x16x32xf32>
    %cst_10 = arith.constant dense<0.000000e+00> : vector<16xf32>
    %13 = vector.multi_reduction <add>, %12, %cst_10 [0, 2] : vector<2x16x32xf32> to vector<16xf32>
    %14 = vector.shape_cast %13 : vector<16xf32> to vector<1x16xf32>
    %15 = arith.addf %11, %14 : vector<1x16xf32>
    %c0_11 = arith.constant 0 : index
    %c0_12 = arith.constant 0 : index
    %16 = vector.load %arg11[%c0_11, %c0_12] : memref<1x16xf32, #tpu.memory_space<vmem>>, vector<1x16xf32>
    tpu.vector_store %arg11[%c0_11, %c0_12], %15 {strides = array<i32>} : memref<1x16xf32, #tpu.memory_space<vmem>>, vector<1x16xf32>,
    %c0_i32_13 = arith.constant 0 : i32
    %17 = arith.cmpi eq, %arg0, %c0_i32_13 : i32
    %c0_i32_14 = arith.constant 0 : i32
    %18 = arith.cmpi eq, %arg1, %c0_i32_14 : i32
    %19 = arith.andi %17, %18 : i1
    %20 = arith.extui %19 : i1 to i32
    %c0_i32_15 = arith.constant 0 : i32
    %21 = arith.cmpi ne, %20, %c0_i32_15 : i32
    scf.if %21 {
      %c0_16 = arith.constant 0 : index
      %c0_17 = arith.constant 0 : index
      %22 = vector.load %arg10[%c0_16, %c0_17] : memref<1x16xf32, #tpu.memory_space<vmem>>, vector<1x16xf32>
      %cst_18 = arith.constant 1.562500e-02 : f32
      %23 = vector.broadcast %cst_18 : f32 to vector<1x16xf32>
      %24 = arith.mulf %22, %23 : vector<1x16xf32>
      %c0_19 = arith.constant 0 : index
      %c0_20 = arith.constant 0 : index
      %25 = vector.load %arg11[%c0_19, %c0_20] : memref<1x16xf32, #tpu.memory_space<vmem>>, vector<1x16xf32>
      %cst_21 = arith.constant 1.562500e-02 : f32
      %26 = vector.broadcast %cst_21 : f32 to vector<1x16xf32>
      %27 = arith.mulf %25, %26 : vector<1x16xf32>
      %28 = arith.mulf %24, %24 : vector<1x16xf32>
      %29 = arith.subf %27, %28 : vector<1x16xf32>
      %cst_22 = arith.constant 0.000000e+00 : f32
      %30 = vector.broadcast %cst_22 : f32 to vector<1x16xf32>
      %31 = arith.maximumf %29, %30 : vector<1x16xf32>
      %cst_23 = arith.constant 9.99999974E-6 : f32
      %32 = vector.broadcast %cst_23 : f32 to vector<1x16xf32>
      %33 = arith.addf %31, %32 : vector<1x16xf32>
      %34 = math.rsqrt %33 : vector<1x16xf32>
      %c0_24 = arith.constant 0 : index
      %c0_25 = arith.constant 0 : index
      %35 = vector.load %arg3[%c0_24, %c0_25] : memref<2x8xf32, #tpu.memory_space<vmem>>, vector<2x8xf32>
      %c0_26 = arith.constant 0 : index
      %c0_27 = arith.constant 0 : index
      %36 = vector.load %arg4[%c0_26, %c0_27] : memref<8x16xf32, #tpu.memory_space<vmem>>, vector<8x16xf32>
      %cst_28 = arith.constant dense<0.000000e+00> : vector<2x16xf32>
      %37 = tpu.matmul %35, %36, %cst_28 {dimension_numbers = #tpu.dot_dimension_numbers<[1], [0], [0], [1], [0, 0, 1, 1], [], []>} : vector<2x8xf32>, vector<8x16xf32>, vector<2x16xf32> -> vector<2x16xf32>
      %c0_29 = arith.constant 0 : index
      %c0_30 = arith.constant 0 : index
      %38 = vector.load %arg5[%c0_29, %c0_30] : memref<1x16xf32, #tpu.memory_space<vmem>>, vector<1x16xf32>
      %39 = vector.broadcast %38 : vector<1x16xf32> to vector<2x16xf32>
      %40 = arith.addf %37, %39 : vector<2x16xf32>
      %c0_31 = arith.constant 0 : index
      %c0_32 = arith.constant 0 : index
      %41 = vector.load %arg6[%c0_31, %c0_32] : memref<8x16xf32, #tpu.memory_space<vmem>>, vector<8x16xf32>
      %cst_33 = arith.constant dense<0.000000e+00> : vector<2x16xf32>
      %42 = tpu.matmul %35, %41, %cst_33 {dimension_numbers = #tpu.dot_dimension_numbers<[1], [0], [0], [1], [0, 0, 1, 1], [], []>} : vector<2x8xf32>, vector<8x16xf32>, vector<2x16xf32> -> vector<2x16xf32>
      %c0_34 = arith.constant 0 : index
      %c0_35 = arith.constant 0 : index
      %43 = vector.load %arg7[%c0_34, %c0_35] : memref<1x16xf32, #tpu.memory_space<vmem>>, vector<1x16xf32>
      %44 = vector.broadcast %43 : vector<1x16xf32> to vector<2x16xf32>
      %45 = arith.addf %42, %44 : vector<2x16xf32>
      %46 = vector.broadcast %34 : vector<1x16xf32> to vector<2x16xf32>
      %47 = arith.mulf %40, %46 : vector<2x16xf32>
      %48 = vector.broadcast %24 : vector<1x16xf32> to vector<2x16xf32>
      %49 = arith.mulf %48, %47 : vector<2x16xf32>
      %50 = arith.subf %45, %49 : vector<2x16xf32>
      %51 = vector.shape_cast %47 : vector<2x16xf32> to vector<2x16x1xf32>
      %c0_36 = arith.constant 0 : index
      %c0_37 = arith.constant 0 : index
      %c0_38 = arith.constant 0 : index
      %52 = vector.load %arg8[%c0_36, %c0_37, %c0_38] : memref<2x16x1xf32, #tpu.memory_space<vmem>>, vector<2x16x1xf32>
      tpu.vector_store %arg8[%c0_36, %c0_37, %c0_38], %51 {strides = array<i32>} : memref<2x16x1xf32, #tpu.memory_space<vmem>>, vector<2x16x1xf32>,
      %53 = vector.shape_cast %50 : vector<2x16xf32> to vector<2x16x1xf32>
      %c0_39 = arith.constant 0 : index
      %c0_40 = arith.constant 0 : index
      %c0_41 = arith.constant 0 : index
      %54 = vector.load %arg9[%c0_39, %c0_40, %c0_41] : memref<2x16x1xf32, #tpu.memory_space<vmem>>, vector<2x16x1xf32>
      tpu.vector_store %arg9[%c0_39, %c0_40, %c0_41], %53 {strides = array<i32>} : memref<2x16x1xf32, #tpu.memory_space<vmem>>, vector<2x16x1xf32>,
    } else {
    }
    return
  }
  func.func @transform_0(%arg0: i32, %arg1: i32) -> (i32, i32, i32) {
    %c0_i32 = arith.constant 0 : i32
    %c0_i32_0 = arith.constant 0 : i32
    return %arg0, %c0_i32, %arg1 : i32, i32, i32
  }
  func.func @transform_1(%arg0: i32, %arg1: i32) -> (i32, i32) {
    %c0_i32 = arith.constant 0 : i32
    %c0_i32_0 = arith.constant 0 : i32
    %c0_i32_1 = arith.constant 0 : i32
    return %c0_i32, %c0_i32_0 : i32, i32
  }
  func.func @transform_2(%arg0: i32, %arg1: i32) -> (i32, i32) {
    %c0_i32 = arith.constant 0 : i32
    %c0_i32_0 = arith.constant 0 : i32
    %c0_i32_1 = arith.constant 0 : i32
    return %c0_i32, %c0_i32_0 : i32, i32
  }
  func.func @transform_3(%arg0: i32, %arg1: i32) -> (i32, i32) {
    %c0_i32 = arith.constant 0 : i32
    %c0_i32_0 = arith.constant 0 : i32
    %c0_i32_1 = arith.constant 0 : i32
    return %c0_i32, %c0_i32_0 : i32, i32
  }
  func.func @transform_4(%arg0: i32, %arg1: i32) -> (i32, i32) {
    %c0_i32 = arith.constant 0 : i32
    %c0_i32_0 = arith.constant 0 : i32
    %c0_i32_1 = arith.constant 0 : i32
    return %c0_i32, %c0_i32_0 : i32, i32
  }
  func.func @transform_5(%arg0: i32, %arg1: i32) -> (i32, i32) {
    %c0_i32 = arith.constant 0 : i32
    %c0_i32_0 = arith.constant 0 : i32
    %c0_i32_1 = arith.constant 0 : i32
    return %c0_i32, %c0_i32_0 : i32, i32
  }
  func.func @transform_6(%arg0: i32, %arg1: i32) -> (i32, i32, i32) {
    %c0_i32 = arith.constant 0 : i32
    %c0_i32_0 = arith.constant 0 : i32
    %c0_i32_1 = arith.constant 0 : i32
    %c0_i32_2 = arith.constant 0 : i32
    return %c0_i32, %c0_i32_0, %c0_i32_1 : i32, i32, i32
  }
  func.func @transform_7(%arg0: i32, %arg1: i32) -> (i32, i32, i32) {
    %c0_i32 = arith.constant 0 : i32
    %c0_i32_0 = arith.constant 0 : i32
    %c0_i32_1 = arith.constant 0 : i32
    %c0_i32_2 = arith.constant 0 : i32
    return %c0_i32, %c0_i32_0, %c0_i32_1 : i32, i32, i32
  }
}

</mosaic_0001>

<llo_original>
// kernel: tpu_custom_call.1
$region0: #{tpu_custom_call.1}
  #allocation0 [shape = 'u32[]', space=smem, size = 0x4, offset = 0x4, fixed_abs, tag = 'smem constant byte address 0x4 - core index']
  #allocation1 [shape = 'u32[144,128]{1,0:T(1,128)}', space=vmem, size = 0x12000, scoped, tag = 'internal scratch']
  #allocation2 [shape = 'f32[1,16]{1,0:T(1,128)}', space=vmem, size = 0x200, scoped, tag = 'scratch operand']
  #allocation3 [shape = 'f32[1,16]{1,0:T(1,128)}', space=vmem, size = 0x200, scoped, tag = 'scratch operand']
  %s0 = inlined_call_operand.hbm [shape: f32[2,16,32], index: 0, kind: input, shape index: {}]
  %s1 = inlined_call_operand.vmem [shape: f32[2,8], index: 1, kind: input, shape index: {}]
  %s2 = inlined_call_operand.hbm [shape: f32[8,16], index: 2, kind: input, shape index: {}]
  %s3 = inlined_call_operand.vmem [shape: f32[1,16], index: 3, kind: input, shape index: {}]
  %s4 = inlined_call_operand.vmem [shape: f32[8,16], index: 4, kind: input, shape index: {}]
  %s5 = inlined_call_operand.vmem [shape: f32[1,16], index: 5, kind: input, shape index: {}]
  %s6 = inlined_call_operand.vmem [shape: f32[2,16,1], index: 6, kind: output, shape index: {0}]
  %s7 = inlined_call_operand.vmem [shape: f32[2,16,1], index: 7, kind: output, shape index: {1}]
  %8 = xla_tuple %s6, %s7
  %s9 = sld [smem:[#allocation0]]
  $region58: #{tpu_custom_call.1} parent=0
    _
  %s11 = ssub.s32 1, %s9
  %s12 = scalar_select 0, %s11, %s9
  $region1: #{tpu_custom_call.1} parent=0
    #allocation4 [shape = 'u8[16384]{0}', space=vmem, size = 0x4000, scoped, tag = 'input window, operand 0, single buffered']
    #allocation5 [shape = 's32[1]{0}', space=sflag, size = 0x4, scoped, tag = 'scoped memory for tpu_custom_call.1']
    #allocation6 [shape = 'u8[4096]{0}', space=vmem, size = 0x1000, scoped, tag = 'input window, operand 2, single buffered']
    #allocation7 [shape = 's32[1]{0}', space=sflag, size = 0x4, scoped, tag = 'scoped memory for tpu_custom_call.1']
    %13 = vsyncpa [#allocation5], 0
    %14 = vsyncpa [#allocation7], 0
    // Predicated region
    $region2: #{tpu_custom_call.1} parent=1 // pred_check
      _
    $region3: #{tpu_custom_call.1} parent=1 // pred_check_branch
      %16 = sbr.rel (0) target = $region5
    $region4: #{tpu_custom_call.1} parent=1 // pred_region
      %s18 = ssub.s32 512, 512
      %19 = vsyncadd [#allocation5], %s18
      %s20 = sshll.u32 [#allocation4], 4
      %s21 = int_to_ptr.vmem [resolvable:$true] %s20
      %26 = dma.hbm_to_vmem [thread:$0]  %s0, 512, %s21, [#allocation5], 128, 128, 8
    $region5: #{tpu_custom_call.1} parent=1 // pred_fallthru
      _
    // Predicated region
    $region6: #{tpu_custom_call.1} parent=1 // pred_check
      _
    $region7: #{tpu_custom_call.1} parent=1 // pred_check_branch
      %28 = sbr.rel (0) target = $region9
    $region8: #{tpu_custom_call.1} parent=1 // pred_region
      _
    $region9: #{tpu_custom_call.1} parent=1 // pred_fallthru
      _
    // Predicated region
    $region10: #{tpu_custom_call.1} parent=1 // pred_check
      _
    $region11: #{tpu_custom_call.1} parent=1 // pred_check_branch
      %30 = sbr.rel (0) target = $region13
    $region12: #{tpu_custom_call.1} parent=1 // pred_region
      %s32 = ssub.s32 128, 128
      %33 = vsyncadd [#allocation7], %s32
      %s35 = sshll.u32 [#allocation6], 4
      %s36 = int_to_ptr.vmem [resolvable:$true] %s35
      %38 = dma.hbm_to_vmem [thread:$0]  %s2, 128, %s36, [#allocation7]
    $region13: #{tpu_custom_call.1} parent=1 // pred_fallthru
      _
    // Predicated region
    $region14: #{tpu_custom_call.1} parent=1 // pred_check
      _
    $region15: #{tpu_custom_call.1} parent=1 // pred_check_branch
      %40 = sbr.rel (0) target = $region17
    $region16: #{tpu_custom_call.1} parent=1 // pred_region
      _
    $region17: #{tpu_custom_call.1} parent=1 // pred_fallthru
      _
    // Predicated region
    $region18: #{tpu_custom_call.1} parent=1 // pred_check
      _
    $region19: #{tpu_custom_call.1} parent=1 // pred_check_branch
      %42 = sbr.rel (0) target = $region21
    $region20: #{tpu_custom_call.1} parent=1 // pred_region
      _
    $region21: #{tpu_custom_call.1} parent=1 // pred_fallthru
      _
    // Predicated region
    $region22: #{tpu_custom_call.1} parent=1 // pred_check
      _
    $region23: #{tpu_custom_call.1} parent=1 // pred_check_branch
      %44 = sbr.rel (0) target = $region25
    $region24: #{tpu_custom_call.1} parent=1 // pred_region
      _
    $region25: #{tpu_custom_call.1} parent=1 // pred_fallthru
      _
    // Predicated region
    $region26: #{tpu_custom_call.1} parent=1 // pred_check
      _
    $region27: #{tpu_custom_call.1} parent=1 // pred_check_branch
      %46 = sbr.rel (0) target = $region29
    $region28: #{tpu_custom_call.1} parent=1 // pred_region
      %47 = dma.done [#allocation5], 512
    $region29: #{tpu_custom_call.1} parent=1 // pred_fallthru
      _
    // Predicated region
    $region30: #{tpu_custom_call.1} parent=1 // pred_check
      _
    $region31: #{tpu_custom_call.1} parent=1 // pred_check_branch
      %49 = sbr.rel (0) target = $region33
    $region32: #{tpu_custom_call.1} parent=1 // pred_region
      %50 = dma.done [#allocation7], 128
    $region33: #{tpu_custom_call.1} parent=1 // pred_fallthru
      _
    %p51 = scmp.eq.s32.totalorder 0, 0
    %p52 = scmp.eq.s32.totalorder 0, 0
    %p53 = pnand %p51, %p52
    %p54 = pneg %p53
    // Predicated region
    $region34: #{tpu_custom_call.1} parent=1 // pred_check
      _
    $region35: #{tpu_custom_call.1} parent=1 // pred_check_branch
      %56 = sbr.rel (%p53) target = $region37
    $region36: #{tpu_custom_call.1} parent=1 // pred_region
      %vm57 = vcmask 122880
      %58 = vst.msk [vmem:[#allocation2] sm:$0x1] %vm57, 0.0
      %59 = vst.msk [vmem:[#allocation3] sm:$0x1] %vm57, 0.0
    $region37: #{tpu_custom_call.1} parent=1 // pred_fallthru
      _
    %v60 = vld [vmem:[#allocation4] sm:$0xff]
    %v61 = vld [vmem:[#allocation4 + $0x8] sm:$0xff]
    %v62 = vld [vmem:[#allocation4 + $0x10] sm:$0xff]
    %v63 = vld [vmem:[#allocation4 + $0x18] sm:$0xff]
    %v64 = vld [vmem:[#allocation2] sm:$0x1]
    %vm65 = vcmask 261120
    %v66 = vsel %vm65, %v60, 0.0
    %v67 = vsel %vm65, %v62, 0.0
    %v68 = vadd.f32 %v66, %v67
    %69 = vadd.xlane.f32.xlu0 %v68
    %v70 = vpop.xlane.xlu0 %69
    %v71 = vsel %vm65, %v61, 0.0
    %v72 = vsel %vm65, %v63, 0.0
    %v73 = vadd.f32 %v71, %v72
    %74 = vadd.xlane.f32.xlu0 %v73
    %v75 = vpop.xlane.xlu0 %74
    %v78 = vlaneseq
    %v79 = vshrl.u32 %v78, 7
    %v80 = vsub.s32 0, %v79
    %v81 = vrot.slane %v70, %v80
    %v82 = vlaneseq
    %v83 = vshrl.u32 %v82, 7
    %v84 = vsub.s32 1, %v83
    %v85 = vrot.slane %v70, %v84
    %v86 = vlaneseq
    %v87 = vshrl.u32 %v86, 7
    %v88 = vsub.s32 2, %v87
    %v89 = vrot.slane %v70, %v88
    %v90 = vlaneseq
    %v91 = vshrl.u32 %v90, 7
    %v92 = vsub.s32 3, %v91
    %v93 = vrot.slane %v70, %v92
    %v94 = vlaneseq
    %v95 = vshrl.u32 %v94, 7
    %v96 = vsub.s32 4, %v95
    %v97 = vrot.slane %v70, %v96
    %v98 = vlaneseq
    %v99 = vshrl.u32 %v98, 7
    %v100 = vsub.s32 5, %v99
    %v101 = vrot.slane %v70, %v100
    %v102 = vlaneseq
    %v103 = vshrl.u32 %v102, 7
    %v104 = vsub.s32 6, %v103
    %v105 = vrot.slane %v70, %v104
    %v106 = vlaneseq
    %v107 = vshrl.u32 %v106, 7
    %v108 = vsub.s32 7, %v107
    %v109 = vrot.slane %v70, %v108
    %v110 = vlaneseq
    %v111 = vshrl.u32 %v110, 7
    %v112 = vsub.s32 0, %v111
    %v113 = vrot.slane %v75, %v112
    %v114 = vlaneseq
    %v115 = vshrl.u32 %v114, 7
    %v116 = vsub.s32 1, %v115
    %v117 = vrot.slane %v75, %v116
    %v118 = vlaneseq
    %v119 = vshrl.u32 %v118, 7
    %v120 = vsub.s32 2, %v119
    %v121 = vrot.slane %v75, %v120
    %v122 = vlaneseq
    %v123 = vshrl.u32 %v122, 7
    %v124 = vsub.s32 3, %v123
    %v125 = vrot.slane %v75, %v124
    %v126 = vlaneseq
    %v127 = vshrl.u32 %v126, 7
    %v128 = vsub.s32 4, %v127
    %v129 = vrot.slane %v75, %v128
    %v130 = vlaneseq
    %v131 = vshrl.u32 %v130, 7
    %v132 = vsub.s32 5, %v131
    %v133 = vrot.slane %v75, %v132
    %v134 = vlaneseq
    %v135 = vshrl.u32 %v134, 7
    %v136 = vsub.s32 6, %v135
    %v137 = vrot.slane %v75, %v136
    %v138 = vlaneseq
    %v139 = vshrl.u32 %v138, 7
    %v140 = vsub.s32 7, %v139
    %v141 = vrot.slane %v75, %v140
    %v142 = vcombine.low %v81, %v85
    %v143 = vcombine.low %v89, %v93
    %v144 = vcombine.low %v97, %v101
    %v145 = vcombine.low %v105, %v109
    %v147 = vunpack.c.l.s4 1966171168
    %v148 = vunpack.c.0.s8 %v147
    %v149 = vlaneseq
    %v150 = vshrl.u32 %v149, 7
    %v151 = vsub.s32 %v148, %v150
    %v152 = vrot.slane %v142, %v151
    %v154 = vunpack.c.l.s4 1966171168
    %v155 = vunpack.c.0.s8 %v154
    %v156 = vlaneseq
    %v157 = vshrl.u32 %v156, 7
    %v158 = vsub.s32 %v155, %v157
    %v159 = vrot.slane %v143, %v158
    %v161 = vunpack.c.l.s4 1966171168
    %v162 = vunpack.c.0.s8 %v161
    %v163 = vlaneseq
    %v164 = vshrl.u32 %v163, 7
    %v165 = vsub.s32 %v162, %v164
    %v166 = vrot.slane %v144, %v165
    %v168 = vunpack.c.l.s4 1966171168
    %v169 = vunpack.c.0.s8 %v168
    %v170 = vlaneseq
    %v171 = vshrl.u32 %v170, 7
    %v172 = vsub.s32 %v169, %v171
    %v173 = vrot.slane %v145, %v172
    %v174 = vcombine.low %v152, %v159
    %v175 = vcombine.low %v166, %v173
    %v177 = vunpack.c.l.s4 1966171168
    %v178 = vunpack.c.0.s8 %v177
    %v179 = vlaneseq
    %v180 = vshrl.u32 %v179, 7
    %v181 = vsub.s32 %v178, %v180
    %v182 = vrot.slane %v174, %v181
    %v184 = vunpack.c.l.s4 1966171168
    %v185 = vunpack.c.0.s8 %v184
    %v186 = vlaneseq
    %v187 = vshrl.u32 %v186, 7
    %v188 = vsub.s32 %v185, %v187
    %v189 = vrot.slane %v175, %v188
    %v190 = vcombine.low %v182, %v189
    %v191 = vcombine.low %v113, %v117
    %v192 = vcombine.low %v121, %v125
    %v193 = vcombine.low %v129, %v133
    %v194 = vcombine.low %v137, %v141
    %v196 = vunpack.c.l.s4 1966171168
    %v197 = vunpack.c.0.s8 %v196
    %v198 = vlaneseq
    %v199 = vshrl.u32 %v198, 7
    %v200 = vsub.s32 %v197, %v199
    %v201 = vrot.slane %v191, %v200
    %v203 = vunpack.c.l.s4 1966171168
    %v204 = vunpack.c.0.s8 %v203
    %v205 = vlaneseq
    %v206 = vshrl.u32 %v205, 7
    %v207 = vsub.s32 %v204, %v206
    %v208 = vrot.slane %v192, %v207
    %v210 = vunpack.c.l.s4 1966171168
    %v211 = vunpack.c.0.s8 %v210
    %v212 = vlaneseq
    %v213 = vshrl.u32 %v212, 7
    %v214 = vsub.s32 %v211, %v213
    %v215 = vrot.slane %v193, %v214
    %v217 = vunpack.c.l.s4 1966171168
    %v218 = vunpack.c.0.s8 %v217
    %v219 = vlaneseq
    %v220 = vshrl.u32 %v219, 7
    %v221 = vsub.s32 %v218, %v220
    %v222 = vrot.slane %v194, %v221
    %v223 = vcombine.low %v201, %v208
    %v224 = vcombine.low %v215, %v222
    %v226 = vunpack.c.l.s4 1966171168
    %v227 = vunpack.c.0.s8 %v226
    %v228 = vlaneseq
    %v229 = vshrl.u32 %v228, 7
    %v230 = vsub.s32 %v227, %v229
    %v231 = vrot.slane %v223, %v230
    %v233 = vunpack.c.l.s4 1966171168
    %v234 = vunpack.c.0.s8 %v233
    %v235 = vlaneseq
    %v236 = vshrl.u32 %v235, 7
    %v237 = vsub.s32 %v234, %v236
    %v238 = vrot.slane %v224, %v237
    %v239 = vcombine.low %v231, %v238
    %240 = vset.pattern.permute.xlu0 0
    %241 = vperm.xlu0 %240, %v190
    %v242 = vpop.permute.xlu0 %241
    %243 = vset.pattern.permute.xlu0 0
    %244 = vperm.xlu0 %243, %v239
    %v245 = vpop.permute.xlu0 %244
    %v246 = vlaneseq
    %v247 = vand.u32 %v246, 127
    %v248 = vlaneseq
    %v249 = vshrl.u32 %v248, 7
    %v250 = vsub.s32 %v247, %v249
    %v251 = vrot.slane %v242, %v250
    %v252 = vadd.s32 %v247, 4294967288
    %v253 = vlaneseq
    %v254 = vshrl.u32 %v253, 7
    %v255 = vsub.s32 %v252, %v254
    %v256 = vrot.slane %v245, %v255
    %vm257 = vcmask 130112
    %v258 = vsel %vm257, %v256, %v251
    %v260 = vunpack.c.l.s4 1966171168
    %v261 = vunpack.c.0.s8 %v260
    %v262 = vlaneseq
    %v263 = vshrl.u32 %v262, 7
    %v264 = vsub.s32 %v261, %v263
    %v265 = vrot.slane %v258, %v264
    %v267 = vunpack.c.l.s4 1966171168
    %v268 = vunpack.c.0.s8 %v267
    %v269 = vlaneseq
    %v270 = vshrl.u32 %v269, 7
    %v271 = vsub.s32 %v268, %v270
    %v272 = vrot.slane %v265, %v271
    %v274 = vadd.f32 %v64, %v272
    %vm275 = vcmask 122880
    %276 = vst.msk [vmem:[#allocation2] sm:$0x1] %vm275, %v274
    %v277 = vld [vmem:[#allocation3] sm:$0x1]
    %v278 = vmul.f32 %v60, %v60
    %v279 = vmul.f32 %v61, %v61
    %v280 = vmul.f32 %v62, %v62
    %v281 = vmul.f32 %v63, %v63
    %v282 = vsel %vm65, %v278, 0.0
    %v283 = vsel %vm65, %v280, 0.0
    %v284 = vadd.f32 %v282, %v283
    %285 = vadd.xlane.f32.xlu0 %v284
    %v286 = vpop.xlane.xlu0 %285
    %v287 = vsel %vm65, %v279, 0.0
    %v288 = vsel %vm65, %v281, 0.0
    %v289 = vadd.f32 %v287, %v288
    %290 = vadd.xlane.f32.xlu0 %v289
    %v291 = vpop.xlane.xlu0 %290
    %v294 = vlaneseq
    %v295 = vshrl.u32 %v294, 7
    %v296 = vsub.s32 0, %v295
    %v297 = vrot.slane %v286, %v296
    %v298 = vlaneseq
    %v299 = vshrl.u32 %v298, 7
    %v300 = vsub.s32 1, %v299
    %v301 = vrot.slane %v286, %v300
    %v302 = vlaneseq
    %v303 = vshrl.u32 %v302, 7
    %v304 = vsub.s32 2, %v303
    %v305 = vrot.slane %v286, %v304
    %v306 = vlaneseq
    %v307 = vshrl.u32 %v306, 7
    %v308 = vsub.s32 3, %v307
    %v309 = vrot.slane %v286, %v308
    %v310 = vlaneseq
    %v311 = vshrl.u32 %v310, 7
    %v312 = vsub.s32 4, %v311
    %v313 = vrot.slane %v286, %v312
    %v314 = vlaneseq
    %v315 = vshrl.u32 %v314, 7
    %v316 = vsub.s32 5, %v315
    %v317 = vrot.slane %v286, %v316
    %v318 = vlaneseq
    %v319 = vshrl.u32 %v318, 7
    %v320 = vsub.s32 6, %v319
    %v321 = vrot.slane %v286, %v320
    %v322 = vlaneseq
    %v323 = vshrl.u32 %v322, 7
    %v324 = vsub.s32 7, %v323
    %v325 = vrot.slane %v286, %v324
    %v326 = vlaneseq
    %v327 = vshrl.u32 %v326, 7
    %v328 = vsub.s32 0, %v327
    %v329 = vrot.slane %v291, %v328
    %v330 = vlaneseq
    %v331 = vshrl.u32 %v330, 7
    %v332 = vsub.s32 1, %v331
    %v333 = vrot.slane %v291, %v332
    %v334 = vlaneseq
    %v335 = vshrl.u32 %v334, 7
    %v336 = vsub.s32 2, %v335
    %v337 = vrot.slane %v291, %v336
    %v338 = vlaneseq
    %v339 = vshrl.u32 %v338, 7
    %v340 = vsub.s32 3, %v339
    %v341 = vrot.slane %v291, %v340
    %v342 = vlaneseq
    %v343 = vshrl.u32 %v342, 7
    %v344 = vsub.s32 4, %v343
    %v345 = vrot.slane %v291, %v344
    %v346 = vlaneseq
    %v347 = vshrl.u32 %v346, 7
    %v348 = vsub.s32 5, %v347
    %v349 = vrot.slane %v291, %v348
    %v350 = vlaneseq
    %v351 = vshrl.u32 %v350, 7
    %v352 = vsub.s32 6, %v351
    %v353 = vrot.slane %v291, %v352
    %v354 = vlaneseq
    %v355 = vshrl.u32 %v354, 7
    %v356 = vsub.s32 7, %v355
    %v357 = vrot.slane %v291, %v356
    %v358 = vcombine.low %v297, %v301
    %v359 = vcombine.low %v305, %v309
    %v360 = vcombine.low %v313, %v317
    %v361 = vcombine.low %v321, %v325
    %v363 = vunpack.c.l.s4 1966171168
    %v364 = vunpack.c.0.s8 %v363
    %v365 = vlaneseq
    %v366 = vshrl.u32 %v365, 7
    %v367 = vsub.s32 %v364, %v366
    %v368 = vrot.slane %v358, %v367
    %v370 = vunpack.c.l.s4 1966171168
    %v371 = vunpack.c.0.s8 %v370
    %v372 = vlaneseq
    %v373 = vshrl.u32 %v372, 7
    %v374 = vsub.s32 %v371, %v373
    %v375 = vrot.slane %v359, %v374
    %v377 = vunpack.c.l.s4 1966171168
    %v378 = vunpack.c.0.s8 %v377
    %v379 = vlaneseq
    %v380 = vshrl.u32 %v379, 7
    %v381 = vsub.s32 %v378, %v380
    %v382 = vrot.slane %v360, %v381
    %v384 = vunpack.c.l.s4 1966171168
    %v385 = vunpack.c.0.s8 %v384
    %v386 = vlaneseq
    %v387 = vshrl.u32 %v386, 7
    %v388 = vsub.s32 %v385, %v387
    %v389 = vrot.slane %v361, %v388
    %v390 = vcombine.low %v368, %v375
    %v391 = vcombine.low %v382, %v389
    %v393 = vunpack.c.l.s4 1966171168
    %v394 = vunpack.c.0.s8 %v393
    %v395 = vlaneseq
    %v396 = vshrl.u32 %v395, 7
    %v397 = vsub.s32 %v394, %v396
    %v398 = vrot.slane %v390, %v397
    %v400 = vunpack.c.l.s4 1966171168
    %v401 = vunpack.c.0.s8 %v400
    %v402 = vlaneseq
    %v403 = vshrl.u32 %v402, 7
    %v404 = vsub.s32 %v401, %v403
    %v405 = vrot.slane %v391, %v404
    %v406 = vcombine.low %v398, %v405
    %v407 = vcombine.low %v329, %v333
    %v408 = vcombine.low %v337, %v341
    %v409 = vcombine.low %v345, %v349
    %v410 = vcombine.low %v353, %v357
    %v412 = vunpack.c.l.s4 1966171168
    %v413 = vunpack.c.0.s8 %v412
    %v414 = vlaneseq
    %v415 = vshrl.u32 %v414, 7
    %v416 = vsub.s32 %v413, %v415
    %v417 = vrot.slane %v407, %v416
    %v419 = vunpack.c.l.s4 1966171168
    %v420 = vunpack.c.0.s8 %v419
    %v421 = vlaneseq
    %v422 = vshrl.u32 %v421, 7
    %v423 = vsub.s32 %v420, %v422
    %v424 = vrot.slane %v408, %v423
    %v426 = vunpack.c.l.s4 1966171168
    %v427 = vunpack.c.0.s8 %v426
    %v428 = vlaneseq
    %v429 = vshrl.u32 %v428, 7
    %v430 = vsub.s32 %v427, %v429
    %v431 = vrot.slane %v409, %v430
    %v433 = vunpack.c.l.s4 1966171168
    %v434 = vunpack.c.0.s8 %v433
    %v435 = vlaneseq
    %v436 = vshrl.u32 %v435, 7
    %v437 = vsub.s32 %v434, %v436
    %v438 = vrot.slane %v410, %v437
    %v439 = vcombine.low %v417, %v424
    %v440 = vcombine.low %v431, %v438
    %v442 = vunpack.c.l.s4 1966171168
    %v443 = vunpack.c.0.s8 %v442
    %v444 = vlaneseq
    %v445 = vshrl.u32 %v444, 7
    %v446 = vsub.s32 %v443, %v445
    %v447 = vrot.slane %v439, %v446
    %v449 = vunpack.c.l.s4 1966171168
    %v450 = vunpack.c.0.s8 %v449
    %v451 = vlaneseq
    %v452 = vshrl.u32 %v451, 7
    %v453 = vsub.s32 %v450, %v452
    %v454 = vrot.slane %v440, %v453
    %v455 = vcombine.low %v447, %v454
    %456 = vset.pattern.permute.xlu0 0
    %457 = vperm.xlu0 %456, %v406
    %v458 = vpop.permute.xlu0 %457
    %459 = vset.pattern.permute.xlu0 0
    %460 = vperm.xlu0 %459, %v455
    %v461 = vpop.permute.xlu0 %460
    %v462 = vlaneseq
    %v463 = vshrl.u32 %v462, 7
    %v464 = vsub.s32 %v247, %v463
    %v465 = vrot.slane %v458, %v464
    %v466 = vlaneseq
    %v467 = vshrl.u32 %v466, 7
    %v468 = vsub.s32 %v252, %v467
    %v469 = vrot.slane %v461, %v468
    %v470 = vsel %vm257, %v469, %v465
    %v472 = vunpack.c.l.s4 1966171168
    %v473 = vunpack.c.0.s8 %v472
    %v474 = vlaneseq
    %v475 = vshrl.u32 %v474, 7
    %v476 = vsub.s32 %v473, %v475
    %v477 = vrot.slane %v470, %v476
    %v479 = vunpack.c.l.s4 1966171168
    %v480 = vunpack.c.0.s8 %v479
    %v481 = vlaneseq
    %v482 = vshrl.u32 %v481, 7
    %v483 = vsub.s32 %v480, %v482
    %v484 = vrot.slane %v477, %v483
    %v486 = vadd.f32 %v277, %v484
    %487 = vst.msk [vmem:[#allocation3] sm:$0x1] %vm275, %v486
    // Predicated region
    $region38: #{tpu_custom_call.1} parent=1 // pred_check
      _
    $region39: #{tpu_custom_call.1} parent=1 // pred_check_branch
      %489 = sbr.rel (%p53) target = $region41
    $region40: #{tpu_custom_call.1} parent=1 // pred_region
      %v490 = vld [vmem:[#allocation2] sm:$0x1]
      %v491 = vmul.f32 %v490, 0.015625
      %v492 = vld [vmem:[#allocation3] sm:$0x1]
      %v493 = vmul.f32 %v492, 0.015625
      %v494 = vmul.f32 %v491, %v491
      %v495 = vsub.f32 %v493, %v494
      %v496 = vmax.f32 %v495, 0.0
      %v497 = vadd.f32 %v496, 1e-05
      %v498 = vrsqrt.pop %v497
      %v499 = vld [vmem:[%s1] sm:$0x3]
      %v500 = vld [vmem:[#allocation6] sm:$0xff]
      %v501 = vld [vmem:[%s3] sm:$0x1]
      %v503 = vlaneseq
      %v504 = vshrl.u32 %v503, 7
      %v505 = vsub.s32 0, %v504
      %v506 = vrot.slane %v501, %v505
      %vm508 = vcmask 64512
      %v510 = vsel %vm508, %v499, 0
      %512 = vmatprep.subr.mxu0 0.0
      %513 = vmatpush1.msra.mxu0 %v500
      %514 = vmatprep.subr.mxu0 0.0
      %515 = vmatpush1.msra.mxu0 0.0
      %516 = vmatprep.subr.mxu0 0.0
      %517 = vmatpush1.msra.mxu0 0.0
      %518 = vmatprep.subr.mxu0 0.0
      %519 = vmatpush1.msra.mxu0 0.0
      %520 = vmatprep.subr.mxu0 0.0
      %521 = vmatpush1.msra.mxu0 0.0
      %522 = vmatprep.subr.mxu0 0.0
      %523 = vmatpush1.msra.mxu0 0.0
      %524 = vmatprep.subr.mxu0 0.0
      %525 = vmatpush1.msra.mxu0 0.0
      %526 = vmatprep.subr.mxu0 0.0
      %527 = vmatpush1.msra.mxu0 0.0
      %528 = vmatprep.subr.mxu0 0.0
      %529 = vmatpush1.msra.mxu0 0.0
      %530 = vmatprep.subr.mxu0 0.0
      %531 = vmatpush1.msra.mxu0 0.0
      %532 = vmatprep.subr.mxu0 0.0
      %533 = vmatpush1.msra.mxu0 0.0
      %534 = vmatprep.subr.mxu0 0.0
      %535 = vmatpush1.msra.mxu0 0.0
      %536 = vmatprep.subr.mxu0 0.0
      %537 = vmatpush1.msra.mxu0 0.0
      %538 = vmatprep.subr.mxu0 0.0
      %539 = vmatpush1.msra.mxu0 0.0
      %540 = vmatprep.subr.mxu0 0.0
      %541 = vmatpush1.msra.mxu0 0.0
      %542 = vmatprep.subr.mxu0 0.0
      %543 = vmatpush1.msra.mxu0 0.0
      %544 = vmatprep.subr.mxu0 0.0
      %545 = vmatpush1.msra.mxu0 0.0
      %546 = vmatprep.subr.mxu0 0.0
      %547 = vmatpush1.msra.mxu0 0.0
      %548 = vmatprep.subr.mxu0 0.0
      %549 = vmatpush1.msra.mxu0 0.0
      %550 = vmatprep.subr.mxu0 0.0
      %551 = vmatpush1.msra.mxu0 0.0
      %552 = vmatprep.subr.mxu0 0.0
      %553 = vmatpush1.msra.mxu0 0.0
      %554 = vmatprep.subr.mxu0 0.0
      %555 = vmatpush1.msra.mxu0 0.0
      %556 = vmatprep.subr.mxu0 0.0
      %557 = vmatpush1.msra.mxu0 0.0
      %558 = vmatprep.subr.mxu0 0.0
      %559 = vmatpush1.msra.mxu0 0.0
      %560 = vmatprep.subr.mxu0 0.0
      %561 = vmatpush1.msra.mxu0 0.0
      %562 = vmatprep.subr.mxu0 0.0
      %563 = vmatpush1.msra.mxu0 0.0
      %564 = vmatprep.subr.mxu0 0.0
      %565 = vmatpush1.msra.mxu0 0.0
      %566 = vmatprep.subr.mxu0 0.0
      %567 = vmatpush1.msra.mxu0 0.0
      %568 = vmatprep.subr.mxu0 0.0
      %569 = vmatpush1.msra.mxu0 0.0
      %570 = vmatprep.subr.mxu0 0.0
      %571 = vmatpush1.msra.mxu0 0.0
      %572 = vmatprep.subr.mxu0 0.0
      %573 = vmatpush1.msra.mxu0 0.0
      %574 = vmatprep.subr.mxu0 0.0
      %575 = vmatpush1.msra.mxu0 0.0
      %576 = vmatprep.mubr.f32.mxu0 0.0
      %577 = vmatmul.mubr.f32.gmra.mrb[0].mxu0 %v510
      %v578 = vpop.f32.mrb[0].mxu0
      %v579 = vadd.f32 %v506, %v578
      %v580 = vpop.f32.mrb[0].mxu0
      %581 = vdwg.mxu0
      %v582 = vld [vmem:[%s4] sm:$0xff]
      %v583 = vld [vmem:[%s5] sm:$0x1]
      %v585 = vlaneseq
      %v586 = vshrl.u32 %v585, 7
      %v587 = vsub.s32 0, %v586
      %v588 = vrot.slane %v583, %v587
      %590 = vmatprep.subr.mxu0 0.0
      %591 = vmatpush1.msra.mxu0 %v582
      %592 = vmatprep.subr.mxu0 0.0
      %593 = vmatpush1.msra.mxu0 0.0
      %594 = vmatprep.subr.mxu0 0.0
      %595 = vmatpush1.msra.mxu0 0.0
      %596 = vmatprep.subr.mxu0 0.0
      %597 = vmatpush1.msra.mxu0 0.0
      %598 = vmatprep.subr.mxu0 0.0
      %599 = vmatpush1.msra.mxu0 0.0
      %600 = vmatprep.subr.mxu0 0.0
      %601 = vmatpush1.msra.mxu0 0.0
      %602 = vmatprep.subr.mxu0 0.0
      %603 = vmatpush1.msra.mxu0 0.0
      %604 = vmatprep.subr.mxu0 0.0
      %605 = vmatpush1.msra.mxu0 0.0
      %606 = vmatprep.subr.mxu0 0.0
      %607 = vmatpush1.msra.mxu0 0.0
      %608 = vmatprep.subr.mxu0 0.0
      %609 = vmatpush1.msra.mxu0 0.0
      %610 = vmatprep.subr.mxu0 0.0
      %611 = vmatpush1.msra.mxu0 0.0
      %612 = vmatprep.subr.mxu0 0.0
      %613 = vmatpush1.msra.mxu0 0.0
      %614 = vmatprep.subr.mxu0 0.0
      %615 = vmatpush1.msra.mxu0 0.0
      %616 = vmatprep.subr.mxu0 0.0
      %617 = vmatpush1.msra.mxu0 0.0
      %618 = vmatprep.subr.mxu0 0.0
      %619 = vmatpush1.msra.mxu0 0.0
      %620 = vmatprep.subr.mxu0 0.0
      %621 = vmatpush1.msra.mxu0 0.0
      %622 = vmatprep.subr.mxu0 0.0
      %623 = vmatpush1.msra.mxu0 0.0
      %624 = vmatprep.subr.mxu0 0.0
      %625 = vmatpush1.msra.mxu0 0.0
      %626 = vmatprep.subr.mxu0 0.0
      %627 = vmatpush1.msra.mxu0 0.0
      %628 = vmatprep.subr.mxu0 0.0
      %629 = vmatpush1.msra.mxu0 0.0
      %630 = vmatprep.subr.mxu0 0.0
      %631 = vmatpush1.msra.mxu0 0.0
      %632 = vmatprep.subr.mxu0 0.0
      %633 = vmatpush1.msra.mxu0 0.0
      %634 = vmatprep.subr.mxu0 0.0
      %635 = vmatpush1.msra.mxu0 0.0
      %636 = vmatprep.subr.mxu0 0.0
      %637 = vmatpush1.msra.mxu0 0.0
      %638 = vmatprep.subr.mxu0 0.0
      %639 = vmatpush1.msra.mxu0 0.0
      %640 = vmatprep.subr.mxu0 0.0
      %641 = vmatpush1.msra.mxu0 0.0
      %642 = vmatprep.subr.mxu0 0.0
      %643 = vmatpush1.msra.mxu0 0.0
      %644 = vmatprep.subr.mxu0 0.0
      %645 = vmatpush1.msra.mxu0 0.0
      %646 = vmatprep.subr.mxu0 0.0
      %647 = vmatpush1.msra.mxu0 0.0
      %648 = vmatprep.subr.mxu0 0.0
      %649 = vmatpush1.msra.mxu0 0.0
      %650 = vmatprep.subr.mxu0 0.0
      %651 = vmatpush1.msra.mxu0 0.0
      %652 = vmatprep.subr.mxu0 0.0
      %653 = vmatpush1.msra.mxu0 0.0
      %654 = vmatprep.mubr.f32.mxu0 0.0
      %655 = vmatmul.mubr.f32.gmra.mrb[0].mxu0 %v510
      %v656 = vpop.f32.mrb[0].mxu0
      %v657 = vadd.f32 %v588, %v656
      %v658 = vpop.f32.mrb[0].mxu0
      %659 = vdwg.mxu0
      %v661 = vlaneseq
      %v662 = vshrl.u32 %v661, 7
      %v663 = vsub.s32 0, %v662
      %v664 = vrot.slane %v498, %v663
      %v666 = vmul.f32 %v579, %v664
      %v668 = vlaneseq
      %v669 = vshrl.u32 %v668, 7
      %v670 = vsub.s32 0, %v669
      %v671 = vrot.slane %v491, %v670
      %v673 = vmul.f32 %v671, %v666
      %v674 = vsub.f32 %v657, %v673
      %v675 = vlaneseq
      %v676 = vshrl.u32 %v675, 7
      %v677 = vsub.s32 0, %v676
      %v678 = vrot.slane %v666, %v677
      %680 = vbcast.lane.b32.xlu0 %v678, 256
      %v681 = vpop.permute.xlu0 %680
      %s683 = sor.u32 256, 8
      %684 = vbcast.lane.b32.xlu0 %v678, %s683
      %v685 = vpop.permute.xlu0 %684
      %v686 = vlaneseq
      %v687 = vshrl.u32 %v686, 7
      %v688 = vsub.s32 1, %v687
      %v689 = vrot.slane %v666, %v688
      %691 = vbcast.lane.b32.xlu0 %v689, 256
      %v692 = vpop.permute.xlu0 %691
      %s694 = sor.u32 256, 8
      %695 = vbcast.lane.b32.xlu0 %v689, %s694
      %v696 = vpop.permute.xlu0 %695
      %vm697 = vcmask 7168
      %698 = vst.msk [vmem:[%s6] sm:$0xff] %vm697, %v681
      %699 = vst.msk [vmem:[%s6 + $0x8] sm:$0xff] %vm697, %v685
      %700 = vst.msk [vmem:[%s6 + $0x10] sm:$0xff] %vm697, %v692
      %701 = vst.msk [vmem:[%s6 + $0x18] sm:$0xff] %vm697, %v696
      %v702 = vlaneseq
      %v703 = vshrl.u32 %v702, 7
      %v704 = vsub.s32 0, %v703
      %v705 = vrot.slane %v674, %v704
      %707 = vbcast.lane.b32.xlu0 %v705, 256
      %v708 = vpop.permute.xlu0 %707
      %s710 = sor.u32 256, 8
      %711 = vbcast.lane.b32.xlu0 %v705, %s710
      %v712 = vpop.permute.xlu0 %711
      %v713 = vlaneseq
      %v714 = vshrl.u32 %v713, 7
      %v715 = vsub.s32 1, %v714
      %v716 = vrot.slane %v674, %v715
      %718 = vbcast.lane.b32.xlu0 %v716, 256
      %v719 = vpop.permute.xlu0 %718
      %s721 = sor.u32 256, 8
      %722 = vbcast.lane.b32.xlu0 %v716, %s721
      %v723 = vpop.permute.xlu0 %722
      %724 = vst.msk [vmem:[%s7] sm:$0xff] %vm697, %v708
      %725 = vst.msk [vmem:[%s7 + $0x8] sm:$0xff] %vm697, %v712
      %726 = vst.msk [vmem:[%s7 + $0x10] sm:$0xff] %vm697, %v719
      %727 = vst.msk [vmem:[%s7 + $0x18] sm:$0xff] %vm697, %v723
    $region41: #{tpu_custom_call.1} parent=1 // pred_fallthru
      _
    // Predicated region
    $region42: #{tpu_custom_call.1} parent=1 // pred_check
      _
    $region43: #{tpu_custom_call.1} parent=1 // pred_check_branch
      %729 = sbr.rel (0) target = $region45
    $region44: #{tpu_custom_call.1} parent=1 // pred_region
      _
    $region45: #{tpu_custom_call.1} parent=1 // pred_fallthru
      _
    // Predicated region
    $region46: #{tpu_custom_call.1} parent=1 // pred_check
      _
    $region47: #{tpu_custom_call.1} parent=1 // pred_check_branch
      %731 = sbr.rel (0) target = $region49
    $region48: #{tpu_custom_call.1} parent=1 // pred_region
      _
    $region49: #{tpu_custom_call.1} parent=1 // pred_fallthru
      _
    // Predicated region
    $region50: #{tpu_custom_call.1} parent=1 // pred_check
      _
    $region51: #{tpu_custom_call.1} parent=1 // pred_check_branch
      %733 = sbr.rel (0) target = $region53
    $region52: #{tpu_custom_call.1} parent=1 // pred_region
      _
    $region53: #{tpu_custom_call.1} parent=1 // pred_fallthru
      _
    // Predicated region
    $region54: #{tpu_custom_call.1} parent=1 // pred_check
      _
    $region55: #{tpu_custom_call.1} parent=1 // pred_check_branch
      %735 = sbr.rel (0) target = $region57
    $region56: #{tpu_custom_call.1} parent=1 // pred_region
      _
    $region57: #{tpu_custom_call.1} parent=1 // pred_fallthru
      _
    %736 = vsyncpa [#allocation5], 1
    %737 = vsyncpa [#allocation7], 1

</llo_original>
